<compile_context>
chip_gen: v5e
topology: v5e:2x2
jax: 0.10.0
libtpu: 0.0.40
codegen_flags: <defaults>
</compile_context>

<pallas_src>
import jax
import jax.numpy as jnp
from jax.experimental import pallas as pl
from jax.experimental.pallas import tpu as pltpu


def _round_up(a, m):
    return (a + m - 1) // m * m


def _dct_attention_kernel(x_ref, w1_ref, w2_ref, g_ref, b_ref, o_ref):
    # x_ref:  (TM, L) f32   rows = flattened (batch, channel)
    # w1_ref: (L, 2C) cdt   fused DCT + Linear1 weight (w1_eff = D @ W1^T)
    # w2_ref: (2C, L) cdt   Linear2 weight, transposed
    # g_ref:  (1, L)  f32   LayerNorm gamma
    # b_ref:  (1, L)  f32   LayerNorm beta
    x = x_ref[...]                      # keep f32 copy for the gating multiply
    cdt = w1_ref.dtype

    # fc1 (DCT fused in) -> ReLU        [MXU, f32 accumulation]
    h = jnp.dot(x.astype(cdt), w1_ref[...], preferred_element_type=jnp.float32)
    h = jnp.maximum(h, 0.0)

    # fc2 -> Sigmoid                    [MXU, f32 accumulation; EUP exp in f32]
    y = jnp.dot(h.astype(cdt), w2_ref[...], preferred_element_type=jnp.float32)
    y = jax.nn.sigmoid(y)

    # LayerNorm over last dim, eps=1e-6, single-pass stats (one XLU pass less).
    inv_l = 1.0 / y.shape[-1]
    mean = jnp.sum(y, axis=-1, keepdims=True) * inv_l
    var = jnp.sum(y * y, axis=-1, keepdims=True) * inv_l - mean * mean
    ln = (y - mean) * jax.lax.rsqrt(var + 1e-6)
    ln = ln * g_ref[...] + b_ref[...]

    # Gating: out = x * lr_weight
    o_ref[...] = x * ln


def dct_attention(x, w1, w2, gamma, beta, *, compute_dtype=jnp.bfloat16,
                  block_rows=512):
    """x: (B, C, L) with L == C.  w1: (2C, C), w2: (C, 2C) — PyTorch Linear weights."""
    B, C, L = x.shape
    assert L == C, "DCT_Attention requires seq_len == channel"
    x = x.astype(jnp.float32)

    # DCT-II matrix (norm=None): D[n, k] = 2*cos(pi*(2n+1)*k/(2L)); dct(row) = row @ D.
    n = jnp.arange(L, dtype=jnp.float32)[:, None]
    k = jnp.arange(L, dtype=jnp.float32)[None, :]
    dct_mat = 2.0 * jnp.cos(jnp.pi * (2.0 * n + 1.0) * k / (2.0 * L))

    # Fuse the DCT into the first Linear:  relu((x @ D) @ W1^T) == relu(x @ (D @ W1^T)).
    w1_eff = jnp.dot(dct_mat, w1.astype(jnp.float32).T).astype(compute_dtype)  # (L, 2C)
    w2t = w2.astype(jnp.float32).T.astype(compute_dtype)                       # (2C, L)
    g = gamma.astype(jnp.float32).reshape(1, L)
    b = beta.astype(jnp.float32).reshape(1, L)

    # Collapse (B, C) into one row axis and tile it (fc + LayerNorm are row-wise).
    rows = B * C
    tm = min(block_rows, _round_up(rows, 8))
    rows_p = _round_up(rows, tm)
    x2d = x.reshape(rows, L)
    if rows_p != rows:
        x2d = jnp.pad(x2d, ((0, rows_p - rows), (0, 0)))

    itemsize = jnp.dtype(compute_dtype).itemsize
    w_bytes = (L * 2 * C + 2 * C * L) * itemsize
    cost = pl.CostEstimate(
        flops=8 * rows * C * L,            # two matmuls: rows*L*2C + rows*2C*L (MAC=2 flops)
        transcendentals=rows * L,          # sigmoid
        bytes_accessed=2 * rows * L * 4 + w_bytes + 2 * L * 4,
    )

    # Per-step working set: double-buffered x/out blocks, weights (also 2x since
    # they sit in the same pipeline; their constant index_map means no re-DMA),
    # plus the f32 intermediates (h, y, ln).  Keep it within v7x's 64 MiB VMEM.
    vmem_est = 2 * (2 * tm * L * 4) + 2 * w_bytes + 4 * tm * 2 * C * 4 + (1 << 20)
    vmem_limit = min(64 * 1024 * 1024, max(32 * 1024 * 1024, int(vmem_est)))

    out2d = pl.pallas_call(
        _dct_attention_kernel,
        out_shape=jax.ShapeDtypeStruct((rows_p, L), jnp.float32),
        grid_spec=pltpu.PrefetchScalarGridSpec(
            num_scalar_prefetch=0,
            grid=(rows_p // tm,),
            in_specs=[
                pl.BlockSpec((tm, L), lambda i: (i, 0)),
                pl.BlockSpec((L, 2 * C), lambda i: (0, 0)),
                pl.BlockSpec((2 * C, L), lambda i: (0, 0)),
                pl.BlockSpec((1, L), lambda i: (0, 0)),
                pl.BlockSpec((1, L), lambda i: (0, 0)),
            ],
            out_specs=pl.BlockSpec((tm, L), lambda i: (i, 0)),
        ),
        compiler_params=pltpu.CompilerParams(
            dimension_semantics=("parallel",),
            vmem_limit_bytes=vmem_limit,
        ),
        cost_estimate=cost,
    )(x2d, w1_eff, w2t, g, b)

    return out2d[:rows].reshape(B, C, L)


def _reference_f32(x, w1, w2, gamma, beta):
    """Un-fused f32 reference mirroring the PyTorch module (eval mode)."""
    B, C, L = x.shape
    n = jnp.arange(L, dtype=jnp.float32)[:, None]
    k = jnp.arange(L, dtype=jnp.float32)[None, :]
    D = 2.0 * jnp.cos(jnp.pi * (2.0 * n + 1.0) * k / (2.0 * L))
    s = jnp.einsum("bcl,lk->bck", x, D)
    h = jnp.maximum(jnp.einsum("bcl,ml->bcm", s, w1), 0.0)
    y = jax.nn.sigmoid(jnp.einsum("bcm,lm->bcl", h, w2))
    mean = jnp.mean(y, axis=-1, keepdims=True)
    var = jnp.mean((y - mean) ** 2, axis=-1, keepdims=True)
    ln = (y - mean) / jnp.sqrt(var + 1e-6) * gamma + beta
    return x * ln


def _reference_mixed(x, w1, w2, gamma, beta, compute_dtype):
    """Reference using the same fused / mixed-precision math as the kernel."""
    B, C, L = x.shape
    n = jnp.arange(L, dtype=jnp.float32)[:, None]
    k = jnp.arange(L, dtype=jnp.float32)[None, :]
    D = 2.0 * jnp.cos(jnp.pi * (2.0 * n + 1.0) * k / (2.0 * L))
    w1_eff = jnp.dot(D, w1.T).astype(compute_dtype)
    w2t = w2.T.astype(compute_dtype)
    h = jnp.maximum(
        jnp.einsum("bcl,lm->bcm", x.astype(compute_dtype), w1_eff,
                   preferred_element_type=jnp.float32), 0.0)
    y = jax.nn.sigmoid(
        jnp.einsum("bcm,ml->bcl", h.astype(compute_dtype), w2t,
                   preferred_element_type=jnp.float32))
    mean = jnp.mean(y, axis=-1, keepdims=True)
    var = jnp.mean(y * y, axis=-1, keepdims=True) - mean * mean
    ln = (y - mean) * jax.lax.rsqrt(var + 1e-6) * gamma + beta
    return x * ln


if __name__ == "__main__":
    B, C = 2, 32
    L = C  # required by the module

    key = jax.random.PRNGKey(0)
    kx, kw1, kw2 = jax.random.split(key, 3)

    x = jax.random.normal(kx, (B, C, L), dtype=jnp.float32)
    # Deterministic synthetic Linear weights (PyTorch shapes: (out, in), no bias)
    w1 = jax.random.normal(kw1, (2 * C, C), dtype=jnp.float32) * (1.0 / jnp.sqrt(C))
    w2 = jax.random.normal(kw2, (C, 2 * C), dtype=jnp.float32) * (1.0 / jnp.sqrt(2 * C))
    # LayerNorm default init
    gamma = jnp.ones((C,), dtype=jnp.float32)
    beta = jnp.zeros((C,), dtype=jnp.float32)

    # Full-precision path: must match the un-fused f32 PyTorch-style reference.
    out_f32 = jax.block_until_ready(
        dct_attention(x, w1, w2, gamma, beta, compute_dtype=jnp.float32))
    ref_f32 = _reference_f32(x, w1, w2, gamma, beta)
    assert out_f32.shape == (B, C, L)
    assert jnp.allclose(out_f32, ref_f32, atol=2e-4, rtol=2e-4), "f32 mismatch vs reference"

    # Default mixed-precision path (bf16 MXU operands, f32 accum / f32 VPU math):
    # check against a JAX reference doing the identical mixed-precision math.
    out_bf16 = jax.block_until_ready(dct_attention(x, w1, w2, gamma, beta))
    ref_bf16 = _reference_mixed(x, w1, w2, gamma, beta, jnp.bfloat16)
    assert out_bf16.shape == (B, C, L)
    assert jnp.allclose(out_bf16, ref_bf16, atol=2e-2, rtol=2e-2), "bf16 mismatch vs reference"

    print("KERNEL_OK")
</pallas_src>

<mosaic_0001>
module attributes {stable_mosaic.version = 11 : i64} {
  func.func @_dct_attention_kernel(%arg0: i32, %arg1: memref<64x32xf32, #tpu.memory_space<vmem>>, %arg2: memref<32x64xf32, #tpu.memory_space<vmem>>, %arg3: memref<64x32xf32, #tpu.memory_space<vmem>>, %arg4: memref<1x32xf32, #tpu.memory_space<vmem>>, %arg5: memref<1x32xf32, #tpu.memory_space<vmem>>, %arg6: memref<64x32xf32, #tpu.memory_space<vmem>>) attributes {dimension_semantics = [#tpu.dimension_semantics<parallel>], iteration_bounds = array<i64: 1>, scalar_prefetch = 0 : i64, scratch_operands = 0 : i64, tpu.core_type = #tpu.core_type<tc>, window_params = [{transform_indices = @transform_0, window_bounds = array<i64: 64, 32>}, {pipeline_mode = #tpu.pipeline_mode<synchronous>, transform_indices = @transform_1, window_bounds = array<i64: 32, 64>}, {pipeline_mode = #tpu.pipeline_mode<synchronous>, transform_indices = @transform_2, window_bounds = array<i64: 64, 32>}, {pipeline_mode = #tpu.pipeline_mode<synchronous>, transform_indices = @transform_3, window_bounds = array<i64: 1, 32>}, {pipeline_mode = #tpu.pipeline_mode<synchronous>, transform_indices = @transform_4, window_bounds = array<i64: 1, 32>}, {transform_indices = @transform_5, window_bounds = array<i64: 64, 32>}]} {
    %c0 = arith.constant 0 : index
    %c0_0 = arith.constant 0 : index
    %0 = vector.load %arg1[%c0, %c0_0] : memref<64x32xf32, #tpu.memory_space<vmem>>, vector<64x32xf32>
    %c0_1 = arith.constant 0 : index
    %c0_2 = arith.constant 0 : index
    %1 = vector.load %arg2[%c0_1, %c0_2] : memref<32x64xf32, #tpu.memory_space<vmem>>, vector<32x64xf32>
    %cst = arith.constant dense<0.000000e+00> : vector<64x64xf32>
    %2 = tpu.matmul %0, %1, %cst {dimension_numbers = #tpu.dot_dimension_numbers<[1], [0], [0], [1], [0, 0, 1, 1], [], []>} : vector<64x32xf32>, vector<32x64xf32>, vector<64x64xf32> -> vector<64x64xf32>
    %cst_3 = arith.constant 0.000000e+00 : f32
    %3 = vector.broadcast %cst_3 : f32 to vector<64x64xf32>
    %4 = arith.maximumf %2, %3 : vector<64x64xf32>
    %c0_4 = arith.constant 0 : index
    %c0_5 = arith.constant 0 : index
    %5 = vector.load %arg3[%c0_4, %c0_5] : memref<64x32xf32, #tpu.memory_space<vmem>>, vector<64x32xf32>
    %cst_6 = arith.constant dense<0.000000e+00> : vector<64x32xf32>
    %6 = tpu.matmul %4, %5, %cst_6 {dimension_numbers = #tpu.dot_dimension_numbers<[1], [0], [0], [1], [0, 0, 1, 1], [], []>} : vector<64x64xf32>, vector<64x32xf32>, vector<64x32xf32> -> vector<64x32xf32>
    %7 = arith.negf %6 : vector<64x32xf32>
    %8 = math.exp %7 : vector<64x32xf32>
    %cst_7 = arith.constant 1.000000e+00 : f32
    %9 = vector.broadcast %cst_7 : f32 to vector<64x32xf32>
    %10 = arith.addf %9, %8 : vector<64x32xf32>
    %11 = arith.divf %9, %10 : vector<64x32xf32>
    %cst_8 = arith.constant dense<0.000000e+00> : vector<64xf32>
    %12 = vector.multi_reduction <add>, %11, %cst_8 [1] : vector<64x32xf32> to vector<64xf32>
    %13 = vector.shape_cast %12 : vector<64xf32> to vector<64x1xf32>
    %cst_9 = arith.constant 3.125000e-02 : f32
    %14 = vector.broadcast %cst_9 : f32 to vector<64x1xf32>
    %15 = arith.mulf %13, %14 : vector<64x1xf32>
    %16 = arith.mulf %11, %11 : vector<64x32xf32>
    %cst_10 = arith.constant dense<0.000000e+00> : vector<64xf32>
    %17 = vector.multi_reduction <add>, %16, %cst_10 [1] : vector<64x32xf32> to vector<64xf32>
    %18 = vector.shape_cast %17 : vector<64xf32> to vector<64x1xf32>
    %cst_11 = arith.constant 3.125000e-02 : f32
    %19 = vector.broadcast %cst_11 : f32 to vector<64x1xf32>
    %20 = arith.mulf %18, %19 : vector<64x1xf32>
    %21 = arith.mulf %15, %15 : vector<64x1xf32>
    %22 = arith.subf %20, %21 : vector<64x1xf32>
    %23 = vector.broadcast %15 : vector<64x1xf32> to vector<64x32xf32>
    %24 = arith.subf %11, %23 : vector<64x32xf32>
    %cst_12 = arith.constant 9.99999997E-7 : f32
    %25 = vector.broadcast %cst_12 : f32 to vector<64x1xf32>
    %26 = arith.addf %22, %25 : vector<64x1xf32>
    %27 = math.rsqrt %26 : vector<64x1xf32>
    %28 = vector.broadcast %27 : vector<64x1xf32> to vector<64x32xf32>
    %29 = arith.mulf %24, %28 : vector<64x32xf32>
    %c0_13 = arith.constant 0 : index
    %c0_14 = arith.constant 0 : index
    %30 = vector.load %arg4[%c0_13, %c0_14] : memref<1x32xf32, #tpu.memory_space<vmem>>, vector<1x32xf32>
    %31 = vector.broadcast %30 : vector<1x32xf32> to vector<64x32xf32>
    %32 = arith.mulf %29, %31 : vector<64x32xf32>
    %c0_15 = arith.constant 0 : index
    %c0_16 = arith.constant 0 : index
    %33 = vector.load %arg5[%c0_15, %c0_16] : memref<1x32xf32, #tpu.memory_space<vmem>>, vector<1x32xf32>
    %34 = vector.broadcast %33 : vector<1x32xf32> to vector<64x32xf32>
    %35 = arith.addf %32, %34 : vector<64x32xf32>
    %36 = arith.mulf %0, %35 : vector<64x32xf32>
    %c0_17 = arith.constant 0 : index
    %c0_18 = arith.constant 0 : index
    %37 = vector.load %arg6[%c0_17, %c0_18] : memref<64x32xf32, #tpu.memory_space<vmem>>, vector<64x32xf32>
    tpu.vector_store %arg6[%c0_17, %c0_18], %36 {strides = array<i32>} : memref<64x32xf32, #tpu.memory_space<vmem>>, vector<64x32xf32>,
    return
  }
  func.func @transform_0(%arg0: i32) -> (i32, i32) {
    %c0_i32 = arith.constant 0 : i32
    %c0_i32_0 = arith.constant 0 : i32
    return %arg0, %c0_i32 : i32, i32
  }
  func.func @transform_1(%arg0: i32) -> (i32, i32) {
    %c0_i32 = arith.constant 0 : i32
    %c0_i32_0 = arith.constant 0 : i32
    %c0_i32_1 = arith.constant 0 : i32
    return %c0_i32, %c0_i32_0 : i32, i32
  }
  func.func @transform_2(%arg0: i32) -> (i32, i32) {
    %c0_i32 = arith.constant 0 : i32
    %c0_i32_0 = arith.constant 0 : i32
    %c0_i32_1 = arith.constant 0 : i32
    return %c0_i32, %c0_i32_0 : i32, i32
  }
  func.func @transform_3(%arg0: i32) -> (i32, i32) {
    %c0_i32 = arith.constant 0 : i32
    %c0_i32_0 = arith.constant 0 : i32
    %c0_i32_1 = arith.constant 0 : i32
    return %c0_i32, %c0_i32_0 : i32, i32
  }
  func.func @transform_4(%arg0: i32) -> (i32, i32) {
    %c0_i32 = arith.constant 0 : i32
    %c0_i32_0 = arith.constant 0 : i32
    %c0_i32_1 = arith.constant 0 : i32
    return %c0_i32, %c0_i32_0 : i32, i32
  }
  func.func @transform_5(%arg0: i32) -> (i32, i32) {
    %c0_i32 = arith.constant 0 : i32
    %c0_i32_0 = arith.constant 0 : i32
    return %arg0, %c0_i32 : i32, i32
  }
}

</mosaic_0001>

<llo_original>
// kernel: tpu_custom_call.1
$region0: #{tpu_custom_call.1}
  #allocation0 [shape = 'u32[]', space=smem, size = 0x4, offset = 0x4, fixed_abs, tag = 'smem constant byte address 0x4 - core index']
  #allocation1 [shape = 'u32[72,128]{1,0:T(1,128)}', space=vmem, size = 0x9000, scoped, tag = 'internal scratch']
  %s0 = inlined_call_operand.vmem [shape: f32[64,32], index: 0, kind: input, shape index: {}]
  %s1 = inlined_call_operand.vmem [shape: f32[32,64], index: 1, kind: input, shape index: {}]
  %s2 = inlined_call_operand.vmem [shape: f32[64,32], index: 2, kind: input, shape index: {}]
  %s3 = inlined_call_operand.vmem [shape: f32[1,32], index: 3, kind: input, shape index: {}]
  %s4 = inlined_call_operand.vmem [shape: f32[1,32], index: 4, kind: input, shape index: {}]
  %s5 = inlined_call_operand.vmem [shape: f32[64,32], index: 5, kind: output, shape index: {}]
  %s6 = sld [smem:[#allocation0]]
  $region30: #{tpu_custom_call.1} parent=0
    _
  %s8 = ssub.s32 1, %s6
  %s9 = scalar_select 0, %s8, %s6
  // Predicated region
  $region2: #{tpu_custom_call.1} parent=0 // pred_check
    _
  $region3: #{tpu_custom_call.1} parent=0 // pred_check_branch
    %11 = sbr.rel (0) target = $region5
  $region4: #{tpu_custom_call.1} parent=0 // pred_region
    _
  $region5: #{tpu_custom_call.1} parent=0 // pred_fallthru
    _
  // Predicated region
  $region6: #{tpu_custom_call.1} parent=0 // pred_check
    _
  $region7: #{tpu_custom_call.1} parent=0 // pred_check_branch
    %13 = sbr.rel (0) target = $region9
  $region8: #{tpu_custom_call.1} parent=0 // pred_region
    _
  $region9: #{tpu_custom_call.1} parent=0 // pred_fallthru
    _
  // Predicated region
  $region10: #{tpu_custom_call.1} parent=0 // pred_check
    _
  $region11: #{tpu_custom_call.1} parent=0 // pred_check_branch
    %15 = sbr.rel (0) target = $region13
  $region12: #{tpu_custom_call.1} parent=0 // pred_region
    _
  $region13: #{tpu_custom_call.1} parent=0 // pred_fallthru
    _
  // Predicated region
  $region14: #{tpu_custom_call.1} parent=0 // pred_check
    _
  $region15: #{tpu_custom_call.1} parent=0 // pred_check_branch
    %17 = sbr.rel (0) target = $region17
  $region16: #{tpu_custom_call.1} parent=0 // pred_region
    _
  $region17: #{tpu_custom_call.1} parent=0 // pred_fallthru
    _
  // Predicated region
  $region18: #{tpu_custom_call.1} parent=0 // pred_check
    _
  $region19: #{tpu_custom_call.1} parent=0 // pred_check_branch
    %19 = sbr.rel (0) target = $region21
  $region20: #{tpu_custom_call.1} parent=0 // pred_region
    _
  $region21: #{tpu_custom_call.1} parent=0 // pred_fallthru
    _
  %v20 = vld [vmem:[%s0] sm:$0xff]
  %v21 = vld [vmem:[%s0 + $0x8] sm:$0xff]
  %v22 = vld [vmem:[%s0 + $0x10] sm:$0xff]
  %v23 = vld [vmem:[%s0 + $0x18] sm:$0xff]
  %v24 = vld [vmem:[%s0 + $0x20] sm:$0xff]
  %v25 = vld [vmem:[%s0 + $0x28] sm:$0xff]
  %v26 = vld [vmem:[%s0 + $0x30] sm:$0xff]
  %v27 = vld [vmem:[%s0 + $0x38] sm:$0xff]
  %v28 = vld [vmem:[%s1] sm:$0xff]
  %v29 = vld [vmem:[%s1 + $0x8] sm:$0xff]
  %v30 = vld [vmem:[%s1 + $0x10] sm:$0xff]
  %v31 = vld [vmem:[%s1 + $0x18] sm:$0xff]
  %vm32 = vcmask 261120
  %v34 = vsel %vm32, %v20, 0
  %v37 = vsel %vm32, %v21, 0
  %v40 = vsel %vm32, %v22, 0
  %v43 = vsel %vm32, %v23, 0
  %v46 = vsel %vm32, %v24, 0
  %v49 = vsel %vm32, %v25, 0
  %v52 = vsel %vm32, %v26, 0
  %v55 = vsel %vm32, %v27, 0
  %57 = vmatpush.msra.mxu0 0.0
  %58 = vmatpush.msra.mxu0 0.0
  %59 = vmatpush.msra.mxu0 0.0
  %60 = vmatpush.msra.mxu0 0.0
  %61 = vmatpush.msra.mxu0 0.0
  %62 = vmatpush.msra.mxu0 0.0
  %63 = vmatpush.msra.mxu0 0.0
  %64 = vmatpush.msra.mxu0 0.0
  %65 = vmatpush.msra.mxu0 0.0
  %66 = vmatpush.msra.mxu0 0.0
  %67 = vmatpush.msra.mxu0 0.0
  %68 = vmatpush.msra.mxu0 0.0
  %69 = vmatpush.msra.mxu0 %v31
  %70 = vmatpush.msra.mxu0 %v30
  %71 = vmatpush.msra.mxu0 %v29
  %72 = vmatpush.msra.mxu0 %v28
  %73 = vmatmul.f32.gmra.mxu0 %v34
  %v74 = vpop.f32.mrf.mxu0
  %v75 = vadd.f32 0.0, %v74
  %76 = vmatmul.f32.gmra.mxu0 %v37
  %v77 = vpop.f32.mrf.mxu0
  %v78 = vadd.f32 0.0, %v77
  %79 = vmatmul.f32.gmra.mxu0 %v40
  %v80 = vpop.f32.mrf.mxu0
  %v81 = vadd.f32 0.0, %v80
  %82 = vmatmul.f32.gmra.mxu0 %v43
  %v83 = vpop.f32.mrf.mxu0
  %v84 = vadd.f32 0.0, %v83
  %85 = vmatmul.f32.gmra.mxu0 %v46
  %v86 = vpop.f32.mrf.mxu0
  %v87 = vadd.f32 0.0, %v86
  %88 = vmatmul.f32.gmra.mxu0 %v49
  %v89 = vpop.f32.mrf.mxu0
  %v90 = vadd.f32 0.0, %v89
  %91 = vmatmul.f32.gmra.mxu0 %v52
  %v92 = vpop.f32.mrf.mxu0
  %v93 = vadd.f32 0.0, %v92
  %94 = vmatmul.f32.gmra.mxu0 %v55
  %v95 = vpop.f32.mrf.mxu0
  %v96 = vadd.f32 0.0, %v95
  %97 = vdwg.mxu0
  %v98 = vmax.f32 %v75, 0.0
  %v99 = vmax.f32 %v78, 0.0
  %v100 = vmax.f32 %v81, 0.0
  %v101 = vmax.f32 %v84, 0.0
  %v102 = vmax.f32 %v87, 0.0
  %v103 = vmax.f32 %v90, 0.0
  %v104 = vmax.f32 %v93, 0.0
  %v105 = vmax.f32 %v96, 0.0
  %v106 = vld [vmem:[%s2] sm:$0xff]
  %v107 = vld [vmem:[%s2 + $0x8] sm:$0xff]
  %v108 = vld [vmem:[%s2 + $0x10] sm:$0xff]
  %v109 = vld [vmem:[%s2 + $0x18] sm:$0xff]
  %v110 = vld [vmem:[%s2 + $0x20] sm:$0xff]
  %v111 = vld [vmem:[%s2 + $0x28] sm:$0xff]
  %v112 = vld [vmem:[%s2 + $0x30] sm:$0xff]
  %v113 = vld [vmem:[%s2 + $0x38] sm:$0xff]
  %vm114 = vcmask 523264
  %v116 = vsel %vm114, %v98, 0
  %v119 = vsel %vm114, %v99, 0
  %v122 = vsel %vm114, %v100, 0
  %v125 = vsel %vm114, %v101, 0
  %v128 = vsel %vm114, %v102, 0
  %v131 = vsel %vm114, %v103, 0
  %v134 = vsel %vm114, %v104, 0
  %v137 = vsel %vm114, %v105, 0
  %139 = vmatpush.msra.mxu0 0.0
  %140 = vmatpush.msra.mxu0 0.0
  %141 = vmatpush.msra.mxu0 0.0
  %142 = vmatpush.msra.mxu0 0.0
  %143 = vmatpush.msra.mxu0 0.0
  %144 = vmatpush.msra.mxu0 0.0
  %145 = vmatpush.msra.mxu0 0.0
  %146 = vmatpush.msra.mxu0 0.0
  %147 = vmatpush.msra.mxu0 %v113
  %148 = vmatpush.msra.mxu0 %v112
  %149 = vmatpush.msra.mxu0 %v111
  %150 = vmatpush.msra.mxu0 %v110
  %151 = vmatpush.msra.mxu0 %v109
  %152 = vmatpush.msra.mxu0 %v108
  %153 = vmatpush.msra.mxu0 %v107
  %154 = vmatpush.msra.mxu0 %v106
  %155 = vmatmul.f32.gmra.mxu0 %v116
  %v156 = vpop.f32.mrf.mxu0
  %v157 = vadd.f32 0.0, %v156
  %158 = vmatmul.f32.gmra.mxu0 %v119
  %v159 = vpop.f32.mrf.mxu0
  %v160 = vadd.f32 0.0, %v159
  %161 = vmatmul.f32.gmra.mxu0 %v122
  %v162 = vpop.f32.mrf.mxu0
  %v163 = vadd.f32 0.0, %v162
  %164 = vmatmul.f32.gmra.mxu0 %v125
  %v165 = vpop.f32.mrf.mxu0
  %v166 = vadd.f32 0.0, %v165
  %167 = vmatmul.f32.gmra.mxu0 %v128
  %v168 = vpop.f32.mrf.mxu0
  %v169 = vadd.f32 0.0, %v168
  %170 = vmatmul.f32.gmra.mxu0 %v131
  %v171 = vpop.f32.mrf.mxu0
  %v172 = vadd.f32 0.0, %v171
  %173 = vmatmul.f32.gmra.mxu0 %v134
  %v174 = vpop.f32.mrf.mxu0
  %v175 = vadd.f32 0.0, %v174
  %176 = vmatmul.f32.gmra.mxu0 %v137
  %v177 = vpop.f32.mrf.mxu0
  %v178 = vadd.f32 0.0, %v177
  %179 = vdwg.mxu0
  %v180 = vxor.u32 %v157, 2147483648
  %v181 = vxor.u32 %v160, 2147483648
  %v182 = vxor.u32 %v163, 2147483648
  %v183 = vxor.u32 %v166, 2147483648
  %v184 = vxor.u32 %v169, 2147483648
  %v185 = vxor.u32 %v172, 2147483648
  %v186 = vxor.u32 %v175, 2147483648
  %v187 = vxor.u32 %v178, 2147483648
  %v188 = vmul.f32 %v180, 1.442695
  %v189 = vpow.pop %v188
  %v190 = vmul.f32 %v181, 1.442695
  %v191 = vpow.pop %v190
  %v192 = vmul.f32 %v182, 1.442695
  %v193 = vpow.pop %v192
  %v194 = vmul.f32 %v183, 1.442695
  %v195 = vpow.pop %v194
  %v196 = vmul.f32 %v184, 1.442695
  %v197 = vpow.pop %v196
  %v198 = vmul.f32 %v185, 1.442695
  %v199 = vpow.pop %v198
  %v200 = vmul.f32 %v186, 1.442695
  %v201 = vpow.pop %v200
  %v202 = vmul.f32 %v187, 1.442695
  %v203 = vpow.pop %v202
  %v204 = vadd.f32 %v189, 1.0
  %v205 = vadd.f32 %v191, 1.0
  %v206 = vadd.f32 %v193, 1.0
  %v207 = vadd.f32 %v195, 1.0
  %v208 = vadd.f32 %v197, 1.0
  %v209 = vadd.f32 %v199, 1.0
  %v210 = vadd.f32 %v201, 1.0
  %v211 = vadd.f32 %v203, 1.0
  %v212 = vrcp.pop %v204
  %v213 = vmul.f32 %v204, %v212
  %v214 = vsub.f32 1.0, %v213
  %v215 = vmul.f32 %v212, %v214
  %v216 = vadd.f32 %v212, %v215
  %vm217 = vweird.f32 %v204
  %vm218 = vweird.f32 %v212
  %vm219 = vmor %vm217, %vm218
  %v220 = vsel %vm219, %v212, %v216
  %v221 = vand.u32 2147483647, %v204
  %vm222 = vcmp.eq.f32.partialorder %v221, 8.507059e+37
  %v223 = vand.u32 %v204, 2147483648
  %v224 = vor.u32 1.1754944e-38, %v223
  %v225 = vsel %vm222, %v224, %v220
  %v226 = vmul.f32 1.0, %v225
  %v227 = vrcp.pop %v205
  %v228 = vmul.f32 %v205, %v227
  %v229 = vsub.f32 1.0, %v228
  %v230 = vmul.f32 %v227, %v229
  %v231 = vadd.f32 %v227, %v230
  %vm232 = vweird.f32 %v205
  %vm233 = vweird.f32 %v227
  %vm234 = vmor %vm232, %vm233
  %v235 = vsel %vm234, %v227, %v231
  %v236 = vand.u32 2147483647, %v205
  %vm237 = vcmp.eq.f32.partialorder %v236, 8.507059e+37
  %v238 = vand.u32 %v205, 2147483648
  %v239 = vor.u32 1.1754944e-38, %v238
  %v240 = vsel %vm237, %v239, %v235
  %v241 = vmul.f32 1.0, %v240
  %v242 = vrcp.pop %v206
  %v243 = vmul.f32 %v206, %v242
  %v244 = vsub.f32 1.0, %v243
  %v245 = vmul.f32 %v242, %v244
  %v246 = vadd.f32 %v242, %v245
  %vm247 = vweird.f32 %v206
  %vm248 = vweird.f32 %v242
  %vm249 = vmor %vm247, %vm248
  %v250 = vsel %vm249, %v242, %v246
  %v251 = vand.u32 2147483647, %v206
  %vm252 = vcmp.eq.f32.partialorder %v251, 8.507059e+37
  %v253 = vand.u32 %v206, 2147483648
  %v254 = vor.u32 1.1754944e-38, %v253
  %v255 = vsel %vm252, %v254, %v250
  %v256 = vmul.f32 1.0, %v255
  %v257 = vrcp.pop %v207
  %v258 = vmul.f32 %v207, %v257
  %v259 = vsub.f32 1.0, %v258
  %v260 = vmul.f32 %v257, %v259
  %v261 = vadd.f32 %v257, %v260
  %vm262 = vweird.f32 %v207
  %vm263 = vweird.f32 %v257
  %vm264 = vmor %vm262, %vm263
  %v265 = vsel %vm264, %v257, %v261
  %v266 = vand.u32 2147483647, %v207
  %vm267 = vcmp.eq.f32.partialorder %v266, 8.507059e+37
  %v268 = vand.u32 %v207, 2147483648
  %v269 = vor.u32 1.1754944e-38, %v268
  %v270 = vsel %vm267, %v269, %v265
  %v271 = vmul.f32 1.0, %v270
  %v272 = vrcp.pop %v208
  %v273 = vmul.f32 %v208, %v272
  %v274 = vsub.f32 1.0, %v273
  %v275 = vmul.f32 %v272, %v274
  %v276 = vadd.f32 %v272, %v275
  %vm277 = vweird.f32 %v208
  %vm278 = vweird.f32 %v272
  %vm279 = vmor %vm277, %vm278
  %v280 = vsel %vm279, %v272, %v276
  %v281 = vand.u32 2147483647, %v208
  %vm282 = vcmp.eq.f32.partialorder %v281, 8.507059e+37
  %v283 = vand.u32 %v208, 2147483648
  %v284 = vor.u32 1.1754944e-38, %v283
  %v285 = vsel %vm282, %v284, %v280
  %v286 = vmul.f32 1.0, %v285
  %v287 = vrcp.pop %v209
  %v288 = vmul.f32 %v209, %v287
  %v289 = vsub.f32 1.0, %v288
  %v290 = vmul.f32 %v287, %v289
  %v291 = vadd.f32 %v287, %v290
  %vm292 = vweird.f32 %v209
  %vm293 = vweird.f32 %v287
  %vm294 = vmor %vm292, %vm293
  %v295 = vsel %vm294, %v287, %v291
  %v296 = vand.u32 2147483647, %v209
  %vm297 = vcmp.eq.f32.partialorder %v296, 8.507059e+37
  %v298 = vand.u32 %v209, 2147483648
  %v299 = vor.u32 1.1754944e-38, %v298
  %v300 = vsel %vm297, %v299, %v295
  %v301 = vmul.f32 1.0, %v300
  %v302 = vrcp.pop %v210
  %v303 = vmul.f32 %v210, %v302
  %v304 = vsub.f32 1.0, %v303
  %v305 = vmul.f32 %v302, %v304
  %v306 = vadd.f32 %v302, %v305
  %vm307 = vweird.f32 %v210
  %vm308 = vweird.f32 %v302
  %vm309 = vmor %vm307, %vm308
  %v310 = vsel %vm309, %v302, %v306
  %v311 = vand.u32 2147483647, %v210
  %vm312 = vcmp.eq.f32.partialorder %v311, 8.507059e+37
  %v313 = vand.u32 %v210, 2147483648
  %v314 = vor.u32 1.1754944e-38, %v313
  %v315 = vsel %vm312, %v314, %v310
  %v316 = vmul.f32 1.0, %v315
  %v317 = vrcp.pop %v211
  %v318 = vmul.f32 %v211, %v317
  %v319 = vsub.f32 1.0, %v318
  %v320 = vmul.f32 %v317, %v319
  %v321 = vadd.f32 %v317, %v320
  %vm322 = vweird.f32 %v211
  %vm323 = vweird.f32 %v317
  %vm324 = vmor %vm322, %vm323
  %v325 = vsel %vm324, %v317, %v321
  %v326 = vand.u32 2147483647, %v211
  %vm327 = vcmp.eq.f32.partialorder %v326, 8.507059e+37
  %v328 = vand.u32 %v211, 2147483648
  %v329 = vor.u32 1.1754944e-38, %v328
  %v330 = vsel %vm327, %v329, %v325
  %v331 = vmul.f32 1.0, %v330
  %v332 = vsel %vm32, %v226, 0.0
  %333 = vadd.xlane.f32.xlu0 %v332
  %v334 = vpop.xlane.xlu0 %333
  %v335 = vsel %vm32, %v241, 0.0
  %336 = vadd.xlane.f32.xlu0 %v335
  %v337 = vpop.xlane.xlu0 %336
  %v338 = vsel %vm32, %v256, 0.0
  %339 = vadd.xlane.f32.xlu0 %v338
  %v340 = vpop.xlane.xlu0 %339
  %v341 = vsel %vm32, %v271, 0.0
  %342 = vadd.xlane.f32.xlu0 %v341
  %v343 = vpop.xlane.xlu0 %342
  %v344 = vsel %vm32, %v286, 0.0
  %345 = vadd.xlane.f32.xlu0 %v344
  %v346 = vpop.xlane.xlu0 %345
  %v347 = vsel %vm32, %v301, 0.0
  %348 = vadd.xlane.f32.xlu0 %v347
  %v349 = vpop.xlane.xlu0 %348
  %v350 = vsel %vm32, %v316, 0.0
  %351 = vadd.xlane.f32.xlu0 %v350
  %v352 = vpop.xlane.xlu0 %351
  %v353 = vsel %vm32, %v331, 0.0
  %354 = vadd.xlane.f32.xlu0 %v353
  %v355 = vpop.xlane.xlu0 %354
  %v356 = vmul.f32 %v334, 0.03125
  %v357 = vmul.f32 %v337, 0.03125
  %v358 = vmul.f32 %v340, 0.03125
  %v359 = vmul.f32 %v343, 0.03125
  %v360 = vmul.f32 %v346, 0.03125
  %v361 = vmul.f32 %v349, 0.03125
  %v362 = vmul.f32 %v352, 0.03125
  %v363 = vmul.f32 %v355, 0.03125
  %v364 = vmul.f32 %v226, %v226
  %v365 = vmul.f32 %v241, %v241
  %v366 = vmul.f32 %v256, %v256
  %v367 = vmul.f32 %v271, %v271
  %v368 = vmul.f32 %v286, %v286
  %v369 = vmul.f32 %v301, %v301
  %v370 = vmul.f32 %v316, %v316
  %v371 = vmul.f32 %v331, %v331
  %v372 = vsel %vm32, %v364, 0.0
  %373 = vadd.xlane.f32.xlu0 %v372
  %v374 = vpop.xlane.xlu0 %373
  %v375 = vsel %vm32, %v365, 0.0
  %376 = vadd.xlane.f32.xlu0 %v375
  %v377 = vpop.xlane.xlu0 %376
  %v378 = vsel %vm32, %v366, 0.0
  %379 = vadd.xlane.f32.xlu0 %v378
  %v380 = vpop.xlane.xlu0 %379
  %v381 = vsel %vm32, %v367, 0.0
  %382 = vadd.xlane.f32.xlu0 %v381
  %v383 = vpop.xlane.xlu0 %382
  %v384 = vsel %vm32, %v368, 0.0
  %385 = vadd.xlane.f32.xlu0 %v384
  %v386 = vpop.xlane.xlu0 %385
  %v387 = vsel %vm32, %v369, 0.0
  %388 = vadd.xlane.f32.xlu0 %v387
  %v389 = vpop.xlane.xlu0 %388
  %v390 = vsel %vm32, %v370, 0.0
  %391 = vadd.xlane.f32.xlu0 %v390
  %v392 = vpop.xlane.xlu0 %391
  %v393 = vsel %vm32, %v371, 0.0
  %394 = vadd.xlane.f32.xlu0 %v393
  %v395 = vpop.xlane.xlu0 %394
  %v396 = vmul.f32 %v374, 0.03125
  %v397 = vmul.f32 %v377, 0.03125
  %v398 = vmul.f32 %v380, 0.03125
  %v399 = vmul.f32 %v383, 0.03125
  %v400 = vmul.f32 %v386, 0.03125
  %v401 = vmul.f32 %v389, 0.03125
  %v402 = vmul.f32 %v392, 0.03125
  %v403 = vmul.f32 %v395, 0.03125
  %v404 = vmul.f32 %v356, %v356
  %v405 = vmul.f32 %v357, %v357
  %v406 = vmul.f32 %v358, %v358
  %v407 = vmul.f32 %v359, %v359
  %v408 = vmul.f32 %v360, %v360
  %v409 = vmul.f32 %v361, %v361
  %v410 = vmul.f32 %v362, %v362
  %v411 = vmul.f32 %v363, %v363
  %v412 = vsub.f32 %v396, %v404
  %v413 = vsub.f32 %v397, %v405
  %v414 = vsub.f32 %v398, %v406
  %v415 = vsub.f32 %v399, %v407
  %v416 = vsub.f32 %v400, %v408
  %v417 = vsub.f32 %v401, %v409
  %v418 = vsub.f32 %v402, %v410
  %v419 = vsub.f32 %v403, %v411
  %v420 = vsub.f32 %v226, %v356
  %v421 = vsub.f32 %v241, %v357
  %v422 = vsub.f32 %v256, %v358
  %v423 = vsub.f32 %v271, %v359
  %v424 = vsub.f32 %v286, %v360
  %v425 = vsub.f32 %v301, %v361
  %v426 = vsub.f32 %v316, %v362
  %v427 = vsub.f32 %v331, %v363
  %v428 = vadd.f32 %v412, 1e-06
  %v429 = vadd.f32 %v413, 1e-06
  %v430 = vadd.f32 %v414, 1e-06
  %v431 = vadd.f32 %v415, 1e-06
  %v432 = vadd.f32 %v416, 1e-06
  %v433 = vadd.f32 %v417, 1e-06
  %v434 = vadd.f32 %v418, 1e-06
  %v435 = vadd.f32 %v419, 1e-06
  %v436 = vrsqrt.pop %v428
  %v437 = vmul.f32 %v436, %v428
  %v438 = vmul.f32 %v437, %v436
  %v439 = vmul.f32 0.5, %v438
  %v440 = vsub.f32 1.5, %v439
  %v441 = vmul.f32 %v436, %v440
  %vm442 = vweird.f32 %v428
  %vm443 = vweird.f32 %v436
  %vm444 = vmor %vm442, %vm443
  %v445 = vsel %vm444, %v436, %v441
  %v446 = vrsqrt.pop %v429
  %v447 = vmul.f32 %v446, %v429
  %v448 = vmul.f32 %v447, %v446
  %v449 = vmul.f32 0.5, %v448
  %v450 = vsub.f32 1.5, %v449
  %v451 = vmul.f32 %v446, %v450
  %vm452 = vweird.f32 %v429
  %vm453 = vweird.f32 %v446
  %vm454 = vmor %vm452, %vm453
  %v455 = vsel %vm454, %v446, %v451
  %v456 = vrsqrt.pop %v430
  %v457 = vmul.f32 %v456, %v430
  %v458 = vmul.f32 %v457, %v456
  %v459 = vmul.f32 0.5, %v458
  %v460 = vsub.f32 1.5, %v459
  %v461 = vmul.f32 %v456, %v460
  %vm462 = vweird.f32 %v430
  %vm463 = vweird.f32 %v456
  %vm464 = vmor %vm462, %vm463
  %v465 = vsel %vm464, %v456, %v461
  %v466 = vrsqrt.pop %v431
  %v467 = vmul.f32 %v466, %v431
  %v468 = vmul.f32 %v467, %v466
  %v469 = vmul.f32 0.5, %v468
  %v470 = vsub.f32 1.5, %v469
  %v471 = vmul.f32 %v466, %v470
  %vm472 = vweird.f32 %v431
  %vm473 = vweird.f32 %v466
  %vm474 = vmor %vm472, %vm473
  %v475 = vsel %vm474, %v466, %v471
  %v476 = vrsqrt.pop %v432
  %v477 = vmul.f32 %v476, %v432
  %v478 = vmul.f32 %v477, %v476
  %v479 = vmul.f32 0.5, %v478
  %v480 = vsub.f32 1.5, %v479
  %v481 = vmul.f32 %v476, %v480
  %vm482 = vweird.f32 %v432
  %vm483 = vweird.f32 %v476
  %vm484 = vmor %vm482, %vm483
  %v485 = vsel %vm484, %v476, %v481
  %v486 = vrsqrt.pop %v433
  %v487 = vmul.f32 %v486, %v433
  %v488 = vmul.f32 %v487, %v486
  %v489 = vmul.f32 0.5, %v488
  %v490 = vsub.f32 1.5, %v489
  %v491 = vmul.f32 %v486, %v490
  %vm492 = vweird.f32 %v433
  %vm493 = vweird.f32 %v486
  %vm494 = vmor %vm492, %vm493
  %v495 = vsel %vm494, %v486, %v491
  %v496 = vrsqrt.pop %v434
  %v497 = vmul.f32 %v496, %v434
  %v498 = vmul.f32 %v497, %v496
  %v499 = vmul.f32 0.5, %v498
  %v500 = vsub.f32 1.5, %v499
  %v501 = vmul.f32 %v496, %v500
  %vm502 = vweird.f32 %v434
  %vm503 = vweird.f32 %v496
  %vm504 = vmor %vm502, %vm503
  %v505 = vsel %vm504, %v496, %v501
  %v506 = vrsqrt.pop %v435
  %v507 = vmul.f32 %v506, %v435
  %v508 = vmul.f32 %v507, %v506
  %v509 = vmul.f32 0.5, %v508
  %v510 = vsub.f32 1.5, %v509
  %v511 = vmul.f32 %v506, %v510
  %vm512 = vweird.f32 %v435
  %vm513 = vweird.f32 %v506
  %vm514 = vmor %vm512, %vm513
  %v515 = vsel %vm514, %v506, %v511
  %v516 = vmul.f32 %v420, %v445
  %v517 = vmul.f32 %v421, %v455
  %v518 = vmul.f32 %v422, %v465
  %v519 = vmul.f32 %v423, %v475
  %v520 = vmul.f32 %v424, %v485
  %v521 = vmul.f32 %v425, %v495
  %v522 = vmul.f32 %v426, %v505
  %v523 = vmul.f32 %v427, %v515
  %v524 = vld [vmem:[%s3] sm:$0x1]
  %v526 = vperm.slane %v524, 0
  %v528 = vmul.f32 %v516, %v526
  %v529 = vmul.f32 %v517, %v526
  %v530 = vmul.f32 %v518, %v526
  %v531 = vmul.f32 %v519, %v526
  %v532 = vmul.f32 %v520, %v526
  %v533 = vmul.f32 %v521, %v526
  %v534 = vmul.f32 %v522, %v526
  %v535 = vmul.f32 %v523, %v526
  %v536 = vld [vmem:[%s4] sm:$0x1]
  %v538 = vperm.slane %v536, 0
  %v540 = vadd.f32 %v528, %v538
  %v541 = vadd.f32 %v529, %v538
  %v542 = vadd.f32 %v530, %v538
  %v543 = vadd.f32 %v531, %v538
  %v544 = vadd.f32 %v532, %v538
  %v545 = vadd.f32 %v533, %v538
  %v546 = vadd.f32 %v534, %v538
  %v547 = vadd.f32 %v535, %v538
  %v548 = vmul.f32 %v20, %v540
  %v549 = vmul.f32 %v21, %v541
  %v550 = vmul.f32 %v22, %v542
  %v551 = vmul.f32 %v23, %v543
  %v552 = vmul.f32 %v24, %v544
  %v553 = vmul.f32 %v25, %v545
  %v554 = vmul.f32 %v26, %v546
  %v555 = vmul.f32 %v27, %v547
  %556 = vst.msk [vmem:[%s5] sm:$0xff] %vm32, %v548
  %557 = vst.msk [vmem:[%s5 + $0x8] sm:$0xff] %vm32, %v549
  %558 = vst.msk [vmem:[%s5 + $0x10] sm:$0xff] %vm32, %v550
  %559 = vst.msk [vmem:[%s5 + $0x18] sm:$0xff] %vm32, %v551
  %560 = vst.msk [vmem:[%s5 + $0x20] sm:$0xff] %vm32, %v552
  %561 = vst.msk [vmem:[%s5 + $0x28] sm:$0xff] %vm32, %v553
  %562 = vst.msk [vmem:[%s5 + $0x30] sm:$0xff] %vm32, %v554
  %563 = vst.msk [vmem:[%s5 + $0x38] sm:$0xff] %vm32, %v555
  // Predicated region
  $region22: #{tpu_custom_call.1} parent=0 // pred_check
    _
  $region23: #{tpu_custom_call.1} parent=0 // pred_check_branch
    %565 = sbr.rel (0) target = $region25
  $region24: #{tpu_custom_call.1} parent=0 // pred_region
    _
  $region25: #{tpu_custom_call.1} parent=0 // pred_fallthru
    _
  // Predicated region
  $region26: #{tpu_custom_call.1} parent=0 // pred_check
    _
  $region27: #{tpu_custom_call.1} parent=0 // pred_check_branch
    %567 = sbr.rel (0) target = $region29
  $region28: #{tpu_custom_call.1} parent=0 // pred_region
    _
  $region29: #{tpu_custom_call.1} parent=0 // pred_fallthru
    _

</llo_original>
